<compile_context>
chip_gen: v7x
topology: tpu7x:2x2x1
jax: 0.10.0
libtpu: 0.0.40
codegen_flags: <defaults>
</compile_context>

<pallas_src>
import functools
import numpy as np
import jax
import jax.numpy as jnp
from jax.experimental import pallas as pl
from jax.experimental.pallas import tpu as pltpu


def _round_up(x, m):
    return (x + m - 1) // m * m


def _conv_lrelu_stats_kernel(xbuf_hbm, wk_ref, b_ref, mask_ref, y_ref, stats_ref,
                             xtile, cols, sem,
                             *, KH, KW, Wp, pad_h, pad_w, halo, lane_tile, src_off,
                             neg_slope):
    n = pl.program_id(0)
    t = pl.program_id(1)
    Cp = y_ref.shape[1]

    # Manual halo'd fetch of this lane tile: blocked BlockSpecs cannot express the
    # overlapping windows the conv taps need.  `start` is 128-aligned by construction.
    start = pl.multiple_of(t * lane_tile + src_off, 128)
    cp = pltpu.make_async_copy(
        xbuf_hbm.at[n, :, pl.ds(start, lane_tile + 2 * halo)], xtile, sem)
    cp.start()
    cp.wait()
    # TODO(synk): double-buffer this halo DMA across grid steps to hide its latency.

    # im2col: each lane-shifted tap is materialized once so the single K-stacked GEMM reads
    # lane-aligned operands.  Scratch kept f32 so sublane offsets (multiples of Cp>=8) are
    # natively (8,128)-aligned; TODO(synk): use a bf16 scratch when Cp % 16 == 0.
    for kh in range(KH):
        for kw in range(KW):
            k = kh * KW + kw
            sh = halo + (kh - pad_h) * Wp + (kw - pad_w)     # static slice start
            cols[k * Cp:(k + 1) * Cp, :] = xtile[:, sh:sh + lane_tile]

    # One (Cp, KH*KW*Cp) x (KH*KW*Cp, LT) bf16 MXU GEMM with f32 accumulation.
    acc = jnp.dot(wk_ref[...], cols[...].astype(jnp.bfloat16),
                  preferred_element_type=jnp.float32)
    yv = acc + b_ref[...]                                    # (Cp, 1) lane-broadcast bias
    yv = jnp.where(yv >= 0, yv, neg_slope * yv)              # LeakyReLU
    y_ref[0] = yv.astype(y_ref.dtype)                        # bf16 store (inter-pass traffic)

    # Per-channel partial stats over interior (non-pad) pixels of this tile only.
    ym = yv * mask_ref[...]                                  # (1, LT) broadcast
    stats_ref[0, 0, :, 0:1] = jnp.sum(ym, axis=-1, keepdims=True)       # sum
    stats_ref[0, 0, :, 1:2] = jnp.sum(ym * yv, axis=-1, keepdims=True)  # sum of squares


def _bn_residual_kernel(y_ref, xres_ref, s_ref, g_ref, bt_ref, o_ref, *, count, eps):
    # E[y^2]-mean^2 in f32 is fine at these scales; switch to a shifted/Welford accumulation
    # if tolerances tighten at very large N*H*W.
    mean = s_ref[:, 0:1] * (1.0 / count)                     # (Cp, 1)
    var = s_ref[:, 1:2] * (1.0 / count) - mean * mean        # biased (train-mode) variance
    scale = g_ref[...] * jax.lax.rsqrt(var + eps)            # (Cp, 1)
    shift = bt_ref[...] - mean * scale                       # (Cp, 1)
    o_ref[0] = (y_ref[0].astype(jnp.float32) * scale + shift
                + xres_ref[0]).astype(o_ref.dtype)


def resblock_forward(x_nchw, conv_w, conv_b, gamma, beta,
                     *, eps=1e-5, neg_slope=0.01, lane_tile=512):
    N, C, H, W = x_nchw.shape
    Cout, Cin, KH, KW = conv_w.shape
    assert Cout == C and Cin == C
    assert lane_tile % 128 == 0
    pad_h, pad_w = (KH - 1) // 2, (KW - 1) // 2
    Hp, Wp = H + 2 * pad_h, W + 2 * pad_w

    Cp = _round_up(max(C, 8), 8)            # sublane-aligned channel count
    Lsp = Hp * Wp                           # flattened padded-spatial size
    LT = lane_tile
    LoutT = _round_up(Lsp, LT)              # lane-dense activation width (multiple of LT)
    n_lt = LoutT // LT
    margin = pad_h * Wp + pad_w             # max |lane shift| any conv tap needs
    halo = _round_up(margin, 128)           # per-tile DMA halo (>= margin, 128-aligned)
    M = _round_up(halo, LT)                 # interior start in xbuf; multiple of LT so pass 2
                                            # can read the residual with a block-aligned spec
    Lbuf = M + LoutT + halo                 # multiple of 128
    m_blk = M // LT

    # ---- layout glue: pads / reshapes only (NCHW is already channels-major) ----
    xc = jnp.pad(x_nchw, ((0, 0), (0, Cp - C), (0, 0), (0, 0)))
    xpad = jnp.pad(xc, ((0, 0), (0, 0), (pad_h, pad_h), (pad_w, pad_w)))
    xflat = xpad.reshape(N, Cp, Lsp).astype(jnp.float32)
    xbuf = jnp.pad(xflat, ((0, 0), (0, 0), (M, Lbuf - M - Lsp)))        # (N, Cp, Lbuf)

    # K-stacked conv weight (bf16): wk[o, (kh*KW+kw)*Cp + i] = conv_w[o, i, kh, kw]
    wcp = jnp.pad(conv_w, ((0, Cp - C), (0, Cp - C), (0, 0), (0, 0)))
    wk = jnp.transpose(wcp, (0, 2, 3, 1)).reshape(Cp, KH * KW * Cp).astype(jnp.bfloat16)
    b2 = jnp.pad(conv_b, (0, Cp - C)).astype(jnp.float32).reshape(Cp, 1)
    g2 = jnp.pad(gamma, (0, Cp - C)).astype(jnp.float32).reshape(Cp, 1)
    bt2 = jnp.pad(beta, (0, Cp - C)).astype(jnp.float32).reshape(Cp, 1)

    m = np.zeros((Hp, Wp), np.float32)
    m[pad_h:pad_h + H, pad_w:pad_w + W] = 1.0                           # interior mask
    mask = jnp.asarray(np.pad(m.reshape(-1), (0, LoutT - Lsp))[None, :])   # (1, LoutT)

    cparams = pltpu.CompilerParams(
        dimension_semantics=("parallel", "parallel"),
        vmem_limit_bytes=32 * 1024 * 1024)

    # ---- pass 1: conv (im2col GEMM) + bias + LeakyReLU + per-tile channel stats ----
    k1 = functools.partial(
        _conv_lrelu_stats_kernel, KH=KH, KW=KW, Wp=Wp, pad_h=pad_h, pad_w=pad_w,
        halo=halo, lane_tile=LT, src_off=M - halo, neg_slope=neg_slope)
    y, stats = pl.pallas_call(
        k1,
        out_shape=(jax.ShapeDtypeStruct((N, Cp, LoutT), jnp.bfloat16),
                   jax.ShapeDtypeStruct((N, n_lt, Cp, 2), jnp.float32)),
        grid=(N, n_lt),
        in_specs=[
            pl.BlockSpec(memory_space=pl.ANY),                         # xbuf: manual halo DMA
            pl.BlockSpec((Cp, KH * KW * Cp), lambda n, t: (0, 0)),     # K-stacked weights
            pl.BlockSpec((Cp, 1), lambda n, t: (0, 0)),                # conv bias (sublanes)
            pl.BlockSpec((1, LT), lambda n, t: (0, t)),                # interior mask tile
        ],
        out_specs=(pl.BlockSpec((1, Cp, LT), lambda n, t: (n, 0, t)),      # y (bf16, lane-dense)
                   pl.BlockSpec((1, 1, Cp, 2), lambda n, t: (n, t, 0, 0))),  # per-tile stats
        scratch_shapes=[pltpu.VMEM((Cp, LT + 2 * halo), jnp.float32),      # halo'd input tile
                        pltpu.VMEM((KH * KW * Cp, LT), jnp.float32),       # im2col block
                        pltpu.SemaphoreType.DMA(())],
        compiler_params=cparams,
    )(xbuf, wk, b2, mask)

    # Tiny cross-(image, tile) partial-sum reduction: O(C) work, left to XLA on purpose.
    stats_sum = jnp.sum(stats, axis=(0, 1))                                # (Cp, 2)

    # ---- pass 2: BN (train-mode batch stats) affine + residual add ----
    k2 = functools.partial(_bn_residual_kernel, count=float(N * H * W), eps=eps)
    out_flat = pl.pallas_call(
        k2,
        out_shape=jax.ShapeDtypeStruct((N, Cp, LoutT), x_nchw.dtype),
        grid=(N, n_lt),
        in_specs=[
            pl.BlockSpec((1, Cp, LT), lambda n, t: (n, 0, t)),             # y (bf16)
            pl.BlockSpec((1, Cp, LT), lambda n, t: (n, 0, t + m_blk)),     # residual from xbuf
            pl.BlockSpec((Cp, 2), lambda n, t: (0, 0)),                    # reduced stats
            pl.BlockSpec((Cp, 1), lambda n, t: (0, 0)),                    # BN gamma
            pl.BlockSpec((Cp, 1), lambda n, t: (0, 0)),                    # BN beta
        ],
        out_specs=pl.BlockSpec((1, Cp, LT), lambda n, t: (n, 0, t)),
        compiler_params=cparams,
    )(y, xbuf, stats_sum, g2, bt2)

    # TODO(synk): skip this strided re-layout entirely if downstream consumes the lane-dense
    # (Cp, LoutT) layout directly.
    out = out_flat[:, :C, :Lsp].reshape(N, C, Hp, Wp)
    return out[:, :, pad_h:pad_h + H, pad_w:pad_w + W]                     # NCHW, interior only


def resblock_reference(x_nchw, conv_w, conv_b, gamma, beta, eps=1e-5, neg_slope=0.01):
    y = jax.lax.conv_general_dilated(
        x_nchw, conv_w, window_strides=(1, 1), padding="SAME",
        dimension_numbers=("NCHW", "OIHW", "NCHW"),
        precision=jax.lax.Precision.HIGHEST)
    y = y + conv_b[None, :, None, None]
    y = jnp.where(y >= 0, y, neg_slope * y)
    mean = jnp.mean(y, axis=(0, 2, 3), keepdims=True)
    var = jnp.mean((y - mean) ** 2, axis=(0, 2, 3), keepdims=True)
    y = (y - mean) * jax.lax.rsqrt(var + eps)
    y = y * gamma[None, :, None, None] + beta[None, :, None, None]
    return y + x_nchw


if __name__ == "__main__":
    key = jax.random.PRNGKey(0)
    k_x, k_w, k_b = jax.random.split(key, 3)
    N, C, H, W = 2, 4, 16, 16
    KH = KW = 3

    x = jax.random.normal(k_x, (N, C, H, W), jnp.float32)
    # nn.Conv2d.reset_parameters: kaiming_uniform(a=sqrt(5)) -> U(-1/sqrt(fan_in), 1/sqrt(fan_in))
    fan_in = C * KH * KW
    bound = 1.0 / np.sqrt(fan_in)
    conv_w = jax.random.uniform(k_w, (C, C, KH, KW), jnp.float32, -bound, bound)
    conv_b = jax.random.uniform(k_b, (C,), jnp.float32, -bound, bound)
    gamma = jnp.ones((C,), jnp.float32)    # nn.BatchNorm2d default affine init
    beta = jnp.zeros((C,), jnp.float32)

    # lane_tile=256 exercises the multi-lane-tile path (LoutT = 512 -> 2 tiles per image).
    out = jax.block_until_ready(
        resblock_forward(x, conv_w, conv_b, gamma, beta, lane_tile=256))
    ref = jax.block_until_ready(resblock_reference(x, conv_w, conv_b, gamma, beta))

    assert out.shape == (N, C, H, W)
    # bf16 conv operands + bf16 inter-pass activation give ~2^-9 relative operand error,
    # amplified ~3x by the BN 1/std scale here; observed max-abs error is ~1e-2 vs the
    # f32-HIGHEST reference, so a 5e-2 absolute bound is a comfortable margin.
    err = float(jnp.max(jnp.abs(out - ref)))
    assert err < 5e-2, f"max abs error {err}"
    print("KERNEL_OK")
</pallas_src>

<mosaic_0001>
module attributes {stable_mosaic.version = 11 : i64} {
  func.func @_conv_lrelu_stats_kernel(%arg0: i32, %arg1: i32, %arg2: memref<2x8x896xf32, #tpu.memory_space<any>>, %arg3: memref<8x72xbf16, #tpu.memory_space<vmem>>, %arg4: memref<8x1xf32, #tpu.memory_space<vmem>>, %arg5: memref<1x256xf32, #tpu.memory_space<vmem>>, %arg6: memref<1x8x256xbf16, #tpu.memory_space<vmem>>, %arg7: memref<1x1x8x2xf32, #tpu.memory_space<vmem>>, %arg8: memref<8x512xf32, #tpu.memory_space<vmem>>, %arg9: memref<72x256xf32, #tpu.memory_space<vmem>>, %arg10: memref<!tpu.dma_semaphore, #tpu.memory_space<semaphore_mem>>) attributes {dimension_semantics = [#tpu.dimension_semantics<parallel>, #tpu.dimension_semantics<parallel>], iteration_bounds = array<i64: 2, 2>, scalar_prefetch = 0 : i64, scratch_operands = 3 : i64, tpu.core_type = #tpu.core_type<tc>, window_params = [{}, {pipeline_mode = #tpu.pipeline_mode<synchronous>, transform_indices = @transform_1, window_bounds = array<i64: 8, 72>}, {pipeline_mode = #tpu.pipeline_mode<synchronous>, transform_indices = @transform_2, window_bounds = array<i64: 8, 1>}, {transform_indices = @transform_3, window_bounds = array<i64: 1, 256>}, {transform_indices = @transform_4, window_bounds = array<i64: 1, 8, 256>}, {transform_indices = @transform_5, window_bounds = array<i64: 1, 1, 8, 2>}]} {
    %c256_i32 = arith.constant 256 : i32
    %0 = arith.muli %arg1, %c256_i32 : i32
    %c128_i32 = arith.constant 128 : i32
    %1 = arith.addi %0, %c128_i32 : i32
    %2 = tpu.assume_multiple %1, 128 : i32
    %c0_i32 = arith.constant 0 : i32
    %3 = tpu.memref_slice %arg2[%arg0, %c0_i32, %2] : memref<2x8x896xf32, #tpu.memory_space<any>> -> memref<1x8x512xf32, #tpu.memory_space<any>>
    %4 = tpu.memref_squeeze %3 : memref<1x8x512xf32, #tpu.memory_space<any>> -> memref<8x512xf32, #tpu.memory_space<any>>
    tpu.enqueue_dma source(%4 : memref<8x512xf32, #tpu.memory_space<any>>) target(%arg8 : memref<8x512xf32, #tpu.memory_space<vmem>>) target_semaphore(%arg10 : memref<!tpu.dma_semaphore, #tpu.memory_space<semaphore_mem>>)
    %c0_i32_0 = arith.constant 0 : i32
    %5 = tpu.memref_slice %arg2[%arg0, %c0_i32_0, %2] : memref<2x8x896xf32, #tpu.memory_space<any>> -> memref<1x8x512xf32, #tpu.memory_space<any>>
    %6 = tpu.memref_squeeze %5 : memref<1x8x512xf32, #tpu.memory_space<any>> -> memref<8x512xf32, #tpu.memory_space<any>>
    tpu.wait_dma2 semaphore(%arg10 : memref<!tpu.dma_semaphore, #tpu.memory_space<semaphore_mem>>) src(%6 : memref<8x512xf32, #tpu.memory_space<any>>) dst(%arg8 : memref<8x512xf32, #tpu.memory_space<vmem>>)
    %c0 = arith.constant 0 : index
    %c109 = arith.constant 109 : index
    %7 = vector.load %arg8[%c0, %c109] : memref<8x512xf32, #tpu.memory_space<vmem>>, vector<8x256xf32>
    %c0_1 = arith.constant 0 : index
    %c0_2 = arith.constant 0 : index
    %8 = vector.load %arg9[%c0_1, %c0_2] : memref<72x256xf32, #tpu.memory_space<vmem>>, vector<8x256xf32>
    tpu.vector_store %arg9[%c0_1, %c0_2], %7 {strides = array<i32>} : memref<72x256xf32, #tpu.memory_space<vmem>>, vector<8x256xf32>,
    %c0_3 = arith.constant 0 : index
    %c110 = arith.constant 110 : index
    %9 = vector.load %arg8[%c0_3, %c110] : memref<8x512xf32, #tpu.memory_space<vmem>>, vector<8x256xf32>
    %c8 = arith.constant 8 : index
    %c0_4 = arith.constant 0 : index
    %10 = vector.load %arg9[%c8, %c0_4] : memref<72x256xf32, #tpu.memory_space<vmem>>, vector<8x256xf32>
    tpu.vector_store %arg9[%c8, %c0_4], %9 {strides = array<i32>} : memref<72x256xf32, #tpu.memory_space<vmem>>, vector<8x256xf32>,
    %c0_5 = arith.constant 0 : index
    %c111 = arith.constant 111 : index
    %11 = vector.load %arg8[%c0_5, %c111] : memref<8x512xf32, #tpu.memory_space<vmem>>, vector<8x256xf32>
    %c16 = arith.constant 16 : index
    %c0_6 = arith.constant 0 : index
    %12 = vector.load %arg9[%c16, %c0_6] : memref<72x256xf32, #tpu.memory_space<vmem>>, vector<8x256xf32>
    tpu.vector_store %arg9[%c16, %c0_6], %11 {strides = array<i32>} : memref<72x256xf32, #tpu.memory_space<vmem>>, vector<8x256xf32>,
    %c0_7 = arith.constant 0 : index
    %c127 = arith.constant 127 : index
    %13 = vector.load %arg8[%c0_7, %c127] : memref<8x512xf32, #tpu.memory_space<vmem>>, vector<8x256xf32>
    %c24 = arith.constant 24 : index
    %c0_8 = arith.constant 0 : index
    %14 = vector.load %arg9[%c24, %c0_8] : memref<72x256xf32, #tpu.memory_space<vmem>>, vector<8x256xf32>
    tpu.vector_store %arg9[%c24, %c0_8], %13 {strides = array<i32>} : memref<72x256xf32, #tpu.memory_space<vmem>>, vector<8x256xf32>,
    %c0_9 = arith.constant 0 : index
    %c128 = arith.constant 128 : index
    %15 = vector.load %arg8[%c0_9, %c128] : memref<8x512xf32, #tpu.memory_space<vmem>>, vector<8x256xf32>
    %c32 = arith.constant 32 : index
    %c0_10 = arith.constant 0 : index
    %16 = vector.load %arg9[%c32, %c0_10] : memref<72x256xf32, #tpu.memory_space<vmem>>, vector<8x256xf32>
    tpu.vector_store %arg9[%c32, %c0_10], %15 {strides = array<i32>} : memref<72x256xf32, #tpu.memory_space<vmem>>, vector<8x256xf32>,
    %c0_11 = arith.constant 0 : index
    %c129 = arith.constant 129 : index
    %17 = vector.load %arg8[%c0_11, %c129] : memref<8x512xf32, #tpu.memory_space<vmem>>, vector<8x256xf32>
    %c40 = arith.constant 40 : index
    %c0_12 = arith.constant 0 : index
    %18 = vector.load %arg9[%c40, %c0_12] : memref<72x256xf32, #tpu.memory_space<vmem>>, vector<8x256xf32>
    tpu.vector_store %arg9[%c40, %c0_12], %17 {strides = array<i32>} : memref<72x256xf32, #tpu.memory_space<vmem>>, vector<8x256xf32>,
    %c0_13 = arith.constant 0 : index
    %c145 = arith.constant 145 : index
    %19 = vector.load %arg8[%c0_13, %c145] : memref<8x512xf32, #tpu.memory_space<vmem>>, vector<8x256xf32>
    %c48 = arith.constant 48 : index
    %c0_14 = arith.constant 0 : index
    %20 = vector.load %arg9[%c48, %c0_14] : memref<72x256xf32, #tpu.memory_space<vmem>>, vector<8x256xf32>
    tpu.vector_store %arg9[%c48, %c0_14], %19 {strides = array<i32>} : memref<72x256xf32, #tpu.memory_space<vmem>>, vector<8x256xf32>,
    %c0_15 = arith.constant 0 : index
    %c146 = arith.constant 146 : index
    %21 = vector.load %arg8[%c0_15, %c146] : memref<8x512xf32, #tpu.memory_space<vmem>>, vector<8x256xf32>
    %c56 = arith.constant 56 : index
    %c0_16 = arith.constant 0 : index
    %22 = vector.load %arg9[%c56, %c0_16] : memref<72x256xf32, #tpu.memory_space<vmem>>, vector<8x256xf32>
    tpu.vector_store %arg9[%c56, %c0_16], %21 {strides = array<i32>} : memref<72x256xf32, #tpu.memory_space<vmem>>, vector<8x256xf32>,
    %c0_17 = arith.constant 0 : index
    %c147 = arith.constant 147 : index
    %23 = vector.load %arg8[%c0_17, %c147] : memref<8x512xf32, #tpu.memory_space<vmem>>, vector<8x256xf32>
    %c64 = arith.constant 64 : index
    %c0_18 = arith.constant 0 : index
    %24 = vector.load %arg9[%c64, %c0_18] : memref<72x256xf32, #tpu.memory_space<vmem>>, vector<8x256xf32>
    tpu.vector_store %arg9[%c64, %c0_18], %23 {strides = array<i32>} : memref<72x256xf32, #tpu.memory_space<vmem>>, vector<8x256xf32>,
    %c0_19 = arith.constant 0 : index
    %c0_20 = arith.constant 0 : index
    %25 = vector.load %arg3[%c0_19, %c0_20] : memref<8x72xbf16, #tpu.memory_space<vmem>>, vector<8x72xbf16>
    %c0_21 = arith.constant 0 : index
    %c0_22 = arith.constant 0 : index
    %26 = vector.load %arg9[%c0_21, %c0_22] : memref<72x256xf32, #tpu.memory_space<vmem>>, vector<72x256xf32>
    %27 = arith.truncf %26 : vector<72x256xf32> to vector<72x256xbf16>
    %cst = arith.constant dense<0.000000e+00> : vector<8x256xf32>
    %28 = tpu.matmul %25, %27, %cst {dimension_numbers = #tpu.dot_dimension_numbers<[1], [0], [0], [1], [0, 0, 1, 1], [], []>} : vector<8x72xbf16>, vector<72x256xbf16>, vector<8x256xf32> -> vector<8x256xf32>
    %c0_23 = arith.constant 0 : index
    %c0_24 = arith.constant 0 : index
    %29 = vector.load %arg4[%c0_23, %c0_24] : memref<8x1xf32, #tpu.memory_space<vmem>>, vector<8x1xf32>
    %30 = vector.broadcast %29 : vector<8x1xf32> to vector<8x256xf32>
    %31 = arith.addf %28, %30 : vector<8x256xf32>
    %cst_25 = arith.constant 0.000000e+00 : f32
    %32 = vector.broadcast %cst_25 : f32 to vector<8x256xf32>
    %33 = arith.cmpf oge, %31, %32 : vector<8x256xf32>
    %cst_26 = arith.constant 0.00999999977 : f32
    %34 = vector.broadcast %cst_26 : f32 to vector<8x256xf32>
    %35 = arith.mulf %34, %31 : vector<8x256xf32>
    %36 = arith.select %33, %31, %35 : vector<8x256xi1>, vector<8x256xf32>
    %37 = arith.truncf %36 : vector<8x256xf32> to vector<8x256xbf16>
    %c0_27 = arith.constant 0 : index
    %c0_28 = arith.constant 0 : index
    %c0_29 = arith.constant 0 : index
    %38 = vector.load %arg6[%c0_27, %c0_28, %c0_29] : memref<1x8x256xbf16, #tpu.memory_space<vmem>>, vector<1x8x256xbf16>
    %39 = vector.shape_cast %38 : vector<1x8x256xbf16> to vector<8x256xbf16>
    %40 = vector.shape_cast %37 : vector<8x256xbf16> to vector<1x8x256xbf16>
    tpu.vector_store %arg6[%c0_27, %c0_28, %c0_29], %40 {strides = array<i32>} : memref<1x8x256xbf16, #tpu.memory_space<vmem>>, vector<1x8x256xbf16>,
    %c0_30 = arith.constant 0 : index
    %c0_31 = arith.constant 0 : index
    %41 = vector.load %arg5[%c0_30, %c0_31] : memref<1x256xf32, #tpu.memory_space<vmem>>, vector<1x256xf32>
    %42 = vector.broadcast %41 : vector<1x256xf32> to vector<8x256xf32>
    %43 = arith.mulf %36, %42 : vector<8x256xf32>
    %cst_32 = arith.constant dense<0.000000e+00> : vector<8xf32>
    %44 = vector.multi_reduction <add>, %43, %cst_32 [1] : vector<8x256xf32> to vector<8xf32>
    %45 = vector.shape_cast %44 : vector<8xf32> to vector<8x1xf32>
    %c0_33 = arith.constant 0 : index
    %c0_34 = arith.constant 0 : index
    %c0_35 = arith.constant 0 : index
    %c0_36 = arith.constant 0 : index
    %46 = vector.load %arg7[%c0_33, %c0_34, %c0_35, %c0_36] : memref<1x1x8x2xf32, #tpu.memory_space<vmem>>, vector<1x1x8x1xf32>
    %47 = vector.shape_cast %46 : vector<1x1x8x1xf32> to vector<8x1xf32>
    %48 = vector.shape_cast %45 : vector<8x1xf32> to vector<1x1x8x1xf32>
    tpu.vector_store %arg7[%c0_33, %c0_34, %c0_35, %c0_36], %48 {strides = array<i32>} : memref<1x1x8x2xf32, #tpu.memory_space<vmem>>, vector<1x1x8x1xf32>,
    %49 = arith.mulf %43, %36 : vector<8x256xf32>
    %cst_37 = arith.constant dense<0.000000e+00> : vector<8xf32>
    %50 = vector.multi_reduction <add>, %49, %cst_37 [1] : vector<8x256xf32> to vector<8xf32>
    %51 = vector.shape_cast %50 : vector<8xf32> to vector<8x1xf32>
    %c0_38 = arith.constant 0 : index
    %c0_39 = arith.constant 0 : index
    %c0_40 = arith.constant 0 : index
    %c1 = arith.constant 1 : index
    %52 = vector.load %arg7[%c0_38, %c0_39, %c0_40, %c1] : memref<1x1x8x2xf32, #tpu.memory_space<vmem>>, vector<1x1x8x1xf32>
    %53 = vector.shape_cast %52 : vector<1x1x8x1xf32> to vector<8x1xf32>
    %54 = vector.shape_cast %51 : vector<8x1xf32> to vector<1x1x8x1xf32>
    tpu.vector_store %arg7[%c0_38, %c0_39, %c0_40, %c1], %54 {strides = array<i32>} : memref<1x1x8x2xf32, #tpu.memory_space<vmem>>, vector<1x1x8x1xf32>,
    return
  }
  func.func @transform_1(%arg0: i32, %arg1: i32) -> (i32, i32) {
    %c0_i32 = arith.constant 0 : i32
    %c0_i32_0 = arith.constant 0 : i32
    %c0_i32_1 = arith.constant 0 : i32
    return %c0_i32, %c0_i32_0 : i32, i32
  }
  func.func @transform_2(%arg0: i32, %arg1: i32) -> (i32, i32) {
    %c0_i32 = arith.constant 0 : i32
    %c0_i32_0 = arith.constant 0 : i32
    %c0_i32_1 = arith.constant 0 : i32
    return %c0_i32, %c0_i32_0 : i32, i32
  }
  func.func @transform_3(%arg0: i32, %arg1: i32) -> (i32, i32) {
    %c0_i32 = arith.constant 0 : i32
    %c0_i32_0 = arith.constant 0 : i32
    return %c0_i32, %arg1 : i32, i32
  }
  func.func @transform_4(%arg0: i32, %arg1: i32) -> (i32, i32, i32) {
    %c0_i32 = arith.constant 0 : i32
    %c0_i32_0 = arith.constant 0 : i32
    return %arg0, %c0_i32, %arg1 : i32, i32, i32
  }
  func.func @transform_5(%arg0: i32, %arg1: i32) -> (i32, i32, i32, i32) {
    %c0_i32 = arith.constant 0 : i32
    %c0_i32_0 = arith.constant 0 : i32
    %c0_i32_1 = arith.constant 0 : i32
    return %arg0, %arg1, %c0_i32, %c0_i32_0 : i32, i32, i32, i32
  }
}

</mosaic_0001>

<llo_original>
// kernel: tpu_custom_call.1
$region0: #{tpu_custom_call.1}
  #allocation0 [shape = 'u32[]', space=smem, size = 0x4, offset = 0x4, fixed_abs, tag = 'smem constant byte address 0x4 - core index']
  #allocation1 [shape = 'u32[144,128]{1,0:T(1,128)}', space=vmem, size = 0x12000, scoped, tag = 'internal scratch']
  #allocation2 [shape = 'f32[8,512]{1,0:T(8,128)}', space=vmem, size = 0x4000, scoped, tag = 'scratch operand']
  #allocation3 [shape = 'f32[72,256]{1,0:T(8,128)}', space=vmem, size = 0x12000, scoped, tag = 'scratch operand']
  #allocation4 [shape = 's32[1]{0}', space=sflag, size = 0x4, scoped, tag = 'scratch operand']
  #allocation7 [shape = 's32[]', space=sflag, size = 0x4, offset = 0, fixed_abs, tag = 'sflag constant byte address 0x0 - dummy sync flag']
  #allocation8 [shape = 's32[]', space=sflag, size = 0x4, offset = 0, fixed_abs, tag = 'sflag constant byte address 0x0 - dummy sync flag']
  #allocation9 [shape = 'u32[]', space=smem, size = 0x4, offset = 0x44, fixed_abs, tag = 'smem constant byte address 0x44 - assertion arg 0']
  #allocation10 [shape = 'u32[]', space=smem, size = 0x4, offset = 0x48, fixed_abs, tag = 'smem constant byte address 0x48 - assertion arg 1']
  %s0 = inlined_call_operand.hbm [shape: f32[2,8,896], index: 0, kind: input, shape index: {}]
  %s1 = inlined_call_operand.vmem [shape: bf16[8,72], index: 1, kind: input, shape index: {}]
  %s2 = inlined_call_operand.vmem [shape: f32[8,1], index: 2, kind: input, shape index: {}]
  %s3 = inlined_call_operand.vmem [shape: f32[1,512], index: 3, kind: input, shape index: {}]
  %s4 = inlined_call_operand.hbm [shape: bf16[2,8,512], index: 4, kind: output, shape index: {0}]
  %s5 = inlined_call_operand.vmem [shape: f32[2,2,8,2], index: 5, kind: output, shape index: {1}]
  %6 = xla_tuple %s4, %s5
  %s7 = sld [smem:[#allocation0]]
  $region57: #{tpu_custom_call.1} parent=0
    _
  %s9 = ssub.s32 1, %s7
  %s10 = scalar_select 0, %s9, %s7
  $region1: #{tpu_custom_call.1} parent=0
    #allocation5 [shape = 'u8[8192]{0}', space=vmem, size = 0x2000, scoped, tag = 'output window, operand 0']
    #allocation6 [shape = 's32[2]{0}', space=sflag, size = 0x8, scoped, tag = 'scoped memory for tpu_custom_call.1']
    %11 = vsyncpa [#allocation6], 0
    %s12 = scalar_lea.sflag [#allocation6], 1
    %13 = vsyncpa %s12, 0
    loop: start=0, step=1, limit=6
    $region2: #{tpu_custom_call.1} parent=1 // loop_pre_header
      _
    $region3: #{tpu_custom_call.1} parent=1 // loop_header
      %s15 = sphi 0, %s19
      %p16 = scmp.ge.s32.totalorder %s15, 6
      %s22 = sphi 0, %s34
      %s23 = sphi 0, %s30
      %s24 = sphi 0, %s22
      %s25 = sphi 0, %s23
      %s26 = sphi 0, %s24
      %s27 = sphi 0, %s25
      %s35 = sphi 0, %s35
      %s37 = sphi 0, %s35
      %s38 = sphi 0, %s37
      %s52 = sphi 0, %s38
      %s56 = sphi 0, %s56
      %s58 = sphi 0, %s56
      %s59 = sphi 0, %s58
      %s73 = sphi 0, %s59
      %s79 = sphi 0, %s81
      %s82 = sphi 0, %s79
      %s83 = sphi 0, %s82
      %s99 = sphi 0, %s83
      %s107 = sphi 0, %s109
      %s110 = sphi 0, %s107
      %s111 = sphi 0, %s110
      %s127 = sphi 0, %s111
      %s135 = sphi 0, %s137
      %s138 = sphi 0, %s135
      %s139 = sphi 0, %s138
      %s155 = sphi 0, %s139
    $region4: #{tpu_custom_call.1} parent=1 // loop_header_branch
      %18 = sbr.rel (%p16) target = $region8
    $region5: #{tpu_custom_call.1} parent=1 // loop_body
      %s20 = ssub.s32 %s15, 1
      %s21 = ssub.s32 %s15, 2
      %s28 = sadd.s32 1, %s23
      %p29 = scmp.ge.s32.totalorder %s28, 2
      %s30 = scalar_select %p29, 0, %s28
      %s31 = sadd.s32 1, %s22
      %s32 = scalar_select %p29, %s31, %s22
      %p33 = scmp.ge.s32.totalorder %s32, 2
      %s34 = scalar_select %p33, 0, %s32
      %s36 = sadd.s32 %s35, 1
      %p39 = scmp.eq.s32.totalorder %s15, 3
      %p40 = scmp.ne.s32.totalorder %s35, %s37
      %p41 = scmp.eq.s32.totalorder %s15, 0
      %p42 = por %p40, %p41
      %p43 = scmp.ne.s32.totalorder %s35, %s37
      %p44 = scmp.eq.s32.totalorder %s20, 3
      %p45 = por %p43, %p44
      %p46 = scmp.ne.s32.totalorder %s37, %s38
      %p47 = scmp.eq.s32.totalorder %s20, 0
      %p48 = por %p46, %p47
      %p49 = scmp.ne.s32.totalorder %s37, %s38
      %p50 = scmp.eq.s32.totalorder %s21, 3
      %p51 = por %p49, %p50
      %p53 = scmp.ne.s32.totalorder %s38, %s52
      %p54 = scmp.eq.s32.totalorder %s21, 0
      %p55 = por %p53, %p54
      %s57 = sadd.s32 %s56, 1
      %p60 = scmp.eq.s32.totalorder %s15, 3
      %p61 = scmp.ne.s32.totalorder %s56, %s58
      %p62 = scmp.eq.s32.totalorder %s15, 0
      %p63 = por %p61, %p62
      %p64 = scmp.ne.s32.totalorder %s56, %s58
      %p65 = scmp.eq.s32.totalorder %s20, 3
      %p66 = por %p64, %p65
      %p67 = scmp.ne.s32.totalorder %s58, %s59
      %p68 = scmp.eq.s32.totalorder %s20, 0
      %p69 = por %p67, %p68
      %p70 = scmp.ne.s32.totalorder %s58, %s59
      %p71 = scmp.eq.s32.totalorder %s21, 3
      %p72 = por %p70, %p71
      %p74 = scmp.ne.s32.totalorder %s59, %s73
      %p75 = scmp.eq.s32.totalorder %s21, 0
      %p76 = por %p74, %p75
      %s77 = ssub.s32 %s23, %s30
      %p78 = scmp.eq.s32.totalorder %s77, 0
      %s80 = sadd.s32 %s79, 1
      %s81 = scalar_select %p78, %s79, %s80
      %p84 = pneg %p78
      %p85 = scmp.eq.s32.totalorder %s15, 3
      %p86 = por %p84, %p85
      %p87 = scmp.ne.s32.totalorder %s79, %s82
      %p88 = scmp.eq.s32.totalorder %s15, 0
      %p89 = por %p87, %p88
      %p90 = scmp.ne.s32.totalorder %s79, %s82
      %p91 = scmp.eq.s32.totalorder %s20, 3
      %p92 = por %p90, %p91
      %p93 = scmp.ne.s32.totalorder %s82, %s83
      %p94 = scmp.eq.s32.totalorder %s20, 0
      %p95 = por %p93, %p94
      %p96 = scmp.ne.s32.totalorder %s82, %s83
      %p97 = scmp.eq.s32.totalorder %s21, 3
      %p98 = por %p96, %p97
      %p100 = scmp.ne.s32.totalorder %s83, %s99
      %p101 = scmp.eq.s32.totalorder %s21, 0
      %p102 = por %p100, %p101
      %s103 = ssub.s32 %s22, %s34
      %s104 = ssub.s32 %s23, %s30
      %s105 = sor.u32 %s103, %s104
      %p106 = scmp.eq.s32.totalorder %s105, 0
      %s108 = sadd.s32 %s107, 1
      %s109 = scalar_select %p106, %s107, %s108
      %p112 = pneg %p106
      %p113 = scmp.eq.s32.totalorder %s15, 3
      %p114 = por %p112, %p113
      %p115 = scmp.ne.s32.totalorder %s107, %s110
      %p116 = scmp.eq.s32.totalorder %s15, 0
      %p117 = por %p115, %p116
      %p118 = scmp.ne.s32.totalorder %s107, %s110
      %p119 = scmp.eq.s32.totalorder %s20, 3
      %p120 = por %p118, %p119
      %p121 = scmp.ne.s32.totalorder %s110, %s111
      %p122 = scmp.eq.s32.totalorder %s20, 0
      %p123 = por %p121, %p122
      %p124 = scmp.ne.s32.totalorder %s110, %s111
      %p125 = scmp.eq.s32.totalorder %s21, 3
      %p126 = por %p124, %p125
      %p128 = scmp.ne.s32.totalorder %s111, %s127
      %p129 = scmp.eq.s32.totalorder %s21, 0
      %p130 = por %p128, %p129
      %s131 = ssub.s32 %s22, %s34
      %s132 = ssub.s32 %s23, %s30
      %s133 = sor.u32 %s131, %s132
      %p134 = scmp.eq.s32.totalorder %s133, 0
      %s136 = sadd.s32 %s135, 1
      %s137 = scalar_select %p134, %s135, %s136
      %p140 = pneg %p134
      %p141 = scmp.eq.s32.totalorder %s15, 3
      %p142 = por %p140, %p141
      %p143 = scmp.ne.s32.totalorder %s135, %s138
      %p144 = scmp.eq.s32.totalorder %s15, 0
      %p145 = por %p143, %p144
      %p146 = scmp.ne.s32.totalorder %s135, %s138
      %p147 = scmp.eq.s32.totalorder %s20, 3
      %p148 = por %p146, %p147
      %p149 = scmp.ne.s32.totalorder %s138, %s139
      %p150 = scmp.eq.s32.totalorder %s20, 0
      %p151 = por %p149, %p150
      %p152 = scmp.ne.s32.totalorder %s138, %s139
      %p153 = scmp.eq.s32.totalorder %s21, 3
      %p154 = por %p152, %p153
      %p156 = scmp.ne.s32.totalorder %s139, %s155
      %p157 = scmp.eq.s32.totalorder %s21, 0
      %p158 = por %p156, %p157
      %p159 = scmp.le.s32.totalorder 1, %s15
      %p160 = scmp.lt.s32.totalorder %s15, 5
      %p161 = pnand %p159, %p160
      %p162 = pneg %p161
      // Predicated region
      $region9: #{tpu_custom_call.1} parent=5 // pred_check
        _
      $region10: #{tpu_custom_call.1} parent=5 // pred_check_branch
        %164 = sbr.rel (%p161) target = $region12
      $region11: #{tpu_custom_call.1} parent=5 // pred_region
        %s165 = ssub.s32 %s15, 1
        // Predicated region
        $region13: #{tpu_custom_call.1} parent=11 // pred_check
          %p166 = pneg %p48
        $region14: #{tpu_custom_call.1} parent=11 // pred_check_branch
          %168 = sbr.rel (%p166) target = $region16
        $region15: #{tpu_custom_call.1} parent=11 // pred_region
          _
        $region16: #{tpu_custom_call.1} parent=11 // pred_fallthru
          _
        // Predicated region
        $region17: #{tpu_custom_call.1} parent=11 // pred_check
          %p169 = pneg %p69
        $region18: #{tpu_custom_call.1} parent=11 // pred_check_branch
          %171 = sbr.rel (%p169) target = $region20
        $region19: #{tpu_custom_call.1} parent=11 // pred_region
          _
        $region20: #{tpu_custom_call.1} parent=11 // pred_fallthru
          _
      $region12: #{tpu_custom_call.1} parent=5 // pred_fallthru
        _
      %p172 = scmp.lt.s32.totalorder %s15, 4
      // Predicated region
      $region21: #{tpu_custom_call.1} parent=5 // pred_check
        %p173 = pneg %p172
      $region22: #{tpu_custom_call.1} parent=5 // pred_check_branch
        %175 = sbr.rel (%p173) target = $region24
      $region23: #{tpu_custom_call.1} parent=5 // pred_region
        // Predicated region
        $region25: #{tpu_custom_call.1} parent=23 // pred_check
          %p176 = pneg %p89
        $region26: #{tpu_custom_call.1} parent=23 // pred_check_branch
          %178 = sbr.rel (%p176) target = $region28
        $region27: #{tpu_custom_call.1} parent=23 // pred_region
          %s179 = smul.u32 2, %s23
          %p180 = scmp.lt.s32.totalorder %s179, 3
          %s181 = scalar_select %p180, %s179, 3
          %s182 = scalar_lea.vmem %s3, %s181
          %s183 = smul.u32 2, %s23
        $region28: #{tpu_custom_call.1} parent=23 // pred_fallthru
          _
      $region24: #{tpu_custom_call.1} parent=5 // pred_fallthru
        _
      %p184 = scmp.le.s32.totalorder 1, %s15
      %p185 = scmp.lt.s32.totalorder %s15, 5
      %p186 = pnand %p184, %p185
      %p187 = pneg %p186
      // Predicated region
      $region29: #{tpu_custom_call.1} parent=5 // pred_check
        _
      $region30: #{tpu_custom_call.1} parent=5 // pred_check_branch
        %189 = sbr.rel (%p186) target = $region32
      $region31: #{tpu_custom_call.1} parent=5 // pred_region
        %s190 = ssub.s32 %s15, 1
        %p191 = pneg %p48
        %p192 = pneg %p45
        %p193 = pneg %p69
        %p194 = pneg %p66
        %s195 = smul.u32 2, %s25
        %p196 = scmp.lt.s32.totalorder %s195, 3
        %s197 = scalar_select %p196, %s195, 3
        %s198 = scalar_lea.vmem %s3, %s197
        %p199 = pneg %p95
        %p200 = pneg %p92
        %p201 = pneg %p123
        %p202 = pneg %p120
        %s203 = sand.u32 %s110, 1
        %s204 = scalar_lea.sflag [#allocation6], %s203
        %s205 = sand.u32 %s110, 1
        %s206 = smul.addr %s205, 8
        %s207 = scalar_lea.vmem [#allocation5], %s206
        %p208 = pneg %p151
        %p209 = pneg %p148
        %p210 = scmp.lt.s32.totalorder %s24, 1
        %s211 = scalar_select %p210, %s24, 1
        %p212 = scmp.lt.s32.totalorder %s25, 1
        %s213 = scalar_select %p212, %s25, 1
        %s214 = smul.addr %s211, 2
        %s215 = sadd.s32 %s213, %s214
        %s216 = smul.addr %s215, 8
        %s217 = scalar_lea.vmem %s5, %s216
        %s218 = smul.u32 2, %s25
        %p219 = scmp.lt.s32.totalorder %s218, 3
        %s220 = scalar_select %p219, %s218, 3
        %s221 = scalar_lea.vmem %s3, %s220
        %s222 = smul.u32 2, %s25
        %s223 = smul.u32 2, %s25
        %p224 = scmp.lt.s32.totalorder %s24, 1
        %s225 = scalar_select %p224, %s24, 1
        %p226 = scmp.lt.s32.totalorder %s25, 1
        %s227 = scalar_select %p226, %s25, 1
        %s228 = smul.addr %s225, 2
        %s229 = sadd.s32 %s227, %s228
        %s230 = smul.addr %s229, 8
        %s231 = scalar_lea.vmem %s5, %s230
        %s233 = smul.u32 %s25, 256
        %s234 = sadd.s32 %s233, 128
        %s235 = sshra.s32 %s234, 7
        %s236 = sand.u32 %s234, 127
        %s237 = smul.u32 %s24, 7
        %s238 = sadd.s32 %s235, %s237
        %s239 = smul.addr %s238, 128
        %s240 = scalar_lea.hbm %s0, %s239
        // Predicated region
        $region33: #{tpu_custom_call.1} parent=31 // pred_check
          _
        $region34: #{tpu_custom_call.1} parent=31 // pred_check_branch
          %242 = sbr.rel target = $region36
        $region35: #{tpu_custom_call.1} parent=31 // pred_region
          %243 = sst [smem:[#allocation9]] [#allocation8]
          %244 = sst [smem:[#allocation10]] [#allocation7]
        $region36: #{tpu_custom_call.1} parent=31 // pred_fallthru
          _
        %246 = shalt.err (0)
        %s248 = sshll.u32 [#allocation2], 4
        %s249 = int_to_ptr.vmem [resolvable:$true] %s248
        %251 = dma.hbm_to_vmem [thread:$0]  %s240, 512, %s249, [#allocation4]
        %s252 = smul.u32 8, 1
        %s253 = smul.u32 %s252, 4
        %s254 = sshll.u32 %s253, 4
        %255 = dma.done [#allocation4], %s254
        %v256 = vld [vmem:[#allocation2] sm:$0xff]
        %v257 = vld [vmem:[#allocation2 + $0x8] sm:$0xff]
        %v258 = vld [vmem:[#allocation2 + $0x10] sm:$0xff]
        %262 = vrot.lane.b32.xlu0 %v256, 19
        %v263 = vpop.permute.xlu0 %262
        %264 = vrot.lane.b32.xlu0 %v257, 19
        %v265 = vpop.permute.xlu0 %264
        %266 = vrot.lane.b32.xlu0 %v258, 19
        %v267 = vpop.permute.xlu0 %266
        %vm268 = vcmask 154624
        %v269 = vsel %vm268, %v263, %v265
        %v270 = vsel %vm268, %v265, %v267
        %273 = vst [vmem:[#allocation3] sm:$0xff] %v269
        %274 = vst [vmem:[#allocation3 + $0x8] sm:$0xff] %v270
        %v275 = vld [vmem:[#allocation2] sm:$0xff]
        %v276 = vld [vmem:[#allocation2 + $0x8] sm:$0xff]
        %v277 = vld [vmem:[#allocation2 + $0x10] sm:$0xff]
        %281 = vrot.lane.b32.xlu0 %v275, 18
        %v282 = vpop.permute.xlu0 %281
        %283 = vrot.lane.b32.xlu0 %v276, 18
        %v284 = vpop.permute.xlu0 %283
        %285 = vrot.lane.b32.xlu0 %v277, 18
        %v286 = vpop.permute.xlu0 %285
        %vm287 = vcmask 146432
        %v288 = vsel %vm287, %v282, %v284
        %v289 = vsel %vm287, %v284, %v286
        %292 = vst [vmem:[#allocation3 + $0x10] sm:$0xff] %v288
        %293 = vst [vmem:[#allocation3 + $0x18] sm:$0xff] %v289
        %v294 = vld [vmem:[#allocation2] sm:$0xff]
        %v295 = vld [vmem:[#allocation2 + $0x8] sm:$0xff]
        %v296 = vld [vmem:[#allocation2 + $0x10] sm:$0xff]
        %300 = vrot.lane.b32.xlu0 %v294, 17
        %v301 = vpop.permute.xlu0 %300
        %302 = vrot.lane.b32.xlu0 %v295, 17
        %v303 = vpop.permute.xlu0 %302
        %304 = vrot.lane.b32.xlu0 %v296, 17
        %v305 = vpop.permute.xlu0 %304
        %vm306 = vcmask 138240
        %v307 = vsel %vm306, %v301, %v303
        %v308 = vsel %vm306, %v303, %v305
        %311 = vst [vmem:[#allocation3 + $0x20] sm:$0xff] %v307
        %312 = vst [vmem:[#allocation3 + $0x28] sm:$0xff] %v308
        %v313 = vld [vmem:[#allocation2] sm:$0xff]
        %v314 = vld [vmem:[#allocation2 + $0x8] sm:$0xff]
        %v315 = vld [vmem:[#allocation2 + $0x10] sm:$0xff]
        %319 = vrot.lane.b32.xlu0 %v313, 1
        %v320 = vpop.permute.xlu0 %319
        %321 = vrot.lane.b32.xlu0 %v314, 1
        %v322 = vpop.permute.xlu0 %321
        %323 = vrot.lane.b32.xlu0 %v315, 1
        %v324 = vpop.permute.xlu0 %323
        %vm325 = vcmask 7168
        %v326 = vsel %vm325, %v320, %v322
        %v327 = vsel %vm325, %v322, %v324
        %330 = vst [vmem:[#allocation3 + $0x30] sm:$0xff] %v326
        %331 = vst [vmem:[#allocation3 + $0x38] sm:$0xff] %v327
        %v332 = vld [vmem:[#allocation2 + $0x8] sm:$0xff]
        %v333 = vld [vmem:[#allocation2 + $0x10] sm:$0xff]
        %334 = vst [vmem:[#allocation3 + $0x40] sm:$0xff] %v332
        %335 = vst [vmem:[#allocation3 + $0x48] sm:$0xff] %v333
        %v336 = vld [vmem:[#allocation2 + $0x8] sm:$0xff]
        %v337 = vld [vmem:[#allocation2 + $0x10] sm:$0xff]
        %v338 = vld [vmem:[#allocation2 + $0x18] sm:$0xff]
        %342 = vrot.lane.b32.xlu0 %v336, 127
        %v343 = vpop.permute.xlu0 %342
        %344 = vrot.lane.b32.xlu0 %v337, 127
        %v345 = vpop.permute.xlu0 %344
        %346 = vrot.lane.b32.xlu0 %v338, 127
        %v347 = vpop.permute.xlu0 %346
        %vm348 = vcmask 1039360
        %v349 = vsel %vm348, %v343, %v345
        %v350 = vsel %vm348, %v345, %v347
        %353 = vst [vmem:[#allocation3 + $0x50] sm:$0xff] %v349
        %354 = vst [vmem:[#allocation3 + $0x58] sm:$0xff] %v350
        %v355 = vld [vmem:[#allocation2 + $0x8] sm:$0xff]
        %v356 = vld [vmem:[#allocation2 + $0x10] sm:$0xff]
        %v357 = vld [vmem:[#allocation2 + $0x18] sm:$0xff]
        %361 = vrot.lane.b32.xlu0 %v355, 111
        %v362 = vpop.permute.xlu0 %361
        %363 = vrot.lane.b32.xlu0 %v356, 111
        %v364 = vpop.permute.xlu0 %363
        %365 = vrot.lane.b32.xlu0 %v357, 111
        %v366 = vpop.permute.xlu0 %365
        %vm367 = vcmask 908288
        %v368 = vsel %vm367, %v362, %v364
        %v369 = vsel %vm367, %v364, %v366
        %372 = vst [vmem:[#allocation3 + $0x60] sm:$0xff] %v368
        %373 = vst [vmem:[#allocation3 + $0x68] sm:$0xff] %v369
        %v374 = vld [vmem:[#allocation2 + $0x8] sm:$0xff]
        %v375 = vld [vmem:[#allocation2 + $0x10] sm:$0xff]
        %v376 = vld [vmem:[#allocation2 + $0x18] sm:$0xff]
        %380 = vrot.lane.b32.xlu0 %v374, 110
        %v381 = vpop.permute.xlu0 %380
        %382 = vrot.lane.b32.xlu0 %v375, 110
        %v383 = vpop.permute.xlu0 %382
        %384 = vrot.lane.b32.xlu0 %v376, 110
        %v385 = vpop.permute.xlu0 %384
        %vm386 = vcmask 900096
        %v387 = vsel %vm386, %v381, %v383
        %v388 = vsel %vm386, %v383, %v385
        %391 = vst [vmem:[#allocation3 + $0x70] sm:$0xff] %v387
        %392 = vst [vmem:[#allocation3 + $0x78] sm:$0xff] %v388
        %v393 = vld [vmem:[#allocation2 + $0x8] sm:$0xff]
        %v394 = vld [vmem:[#allocation2 + $0x10] sm:$0xff]
        %v395 = vld [vmem:[#allocation2 + $0x18] sm:$0xff]
        %399 = vrot.lane.b32.xlu0 %v393, 109
        %v400 = vpop.permute.xlu0 %399
        %401 = vrot.lane.b32.xlu0 %v394, 109
        %v402 = vpop.permute.xlu0 %401
        %403 = vrot.lane.b32.xlu0 %v395, 109
        %v404 = vpop.permute.xlu0 %403
        %vm405 = vcmask 891904
        %v406 = vsel %vm405, %v400, %v402
        %v407 = vsel %vm405, %v402, %v404
        %410 = vst [vmem:[#allocation3 + $0x80] sm:$0xff] %v406
        %411 = vst [vmem:[#allocation3 + $0x88] sm:$0xff] %v407
        %v412 = vld [vmem:[%s1] sm:$0xf]
        %v413 = vld [vmem:[#allocation3] sm:$0xff]
        %v414 = vld [vmem:[#allocation3 + $0x8] sm:$0xff]
        %v415 = vld [vmem:[#allocation3 + $0x10] sm:$0xff]
        %v416 = vld [vmem:[#allocation3 + $0x18] sm:$0xff]
        %v417 = vld [vmem:[#allocation3 + $0x20] sm:$0xff]
        %v418 = vld [vmem:[#allocation3 + $0x28] sm:$0xff]
        %v419 = vld [vmem:[#allocation3 + $0x30] sm:$0xff]
        %v420 = vld [vmem:[#allocation3 + $0x38] sm:$0xff]
        %v421 = vld [vmem:[#allocation3 + $0x40] sm:$0xff]
        %v422 = vld [vmem:[#allocation3 + $0x48] sm:$0xff]
        %v423 = vld [vmem:[#allocation3 + $0x50] sm:$0xff]
        %v424 = vld [vmem:[#allocation3 + $0x58] sm:$0xff]
        %v425 = vld [vmem:[#allocation3 + $0x60] sm:$0xff]
        %v426 = vld [vmem:[#allocation3 + $0x68] sm:$0xff]
        %v427 = vld [vmem:[#allocation3 + $0x70] sm:$0xff]
        %v428 = vld [vmem:[#allocation3 + $0x78] sm:$0xff]
        %v429 = vld [vmem:[#allocation3 + $0x80] sm:$0xff]
        %v430 = vld [vmem:[#allocation3 + $0x88] sm:$0xff]
        %v431 = vpack.c.bf16 %v415, %v413
        %v432 = vpack.c.bf16 %v416, %v414
        %v433 = vpack.c.bf16 %v419, %v417
        %v434 = vpack.c.bf16 %v420, %v418
        %v435 = vpack.c.bf16 %v423, %v421
        %v436 = vpack.c.bf16 %v424, %v422
        %v437 = vpack.c.bf16 %v427, %v425
        %v438 = vpack.c.bf16 %v428, %v426
        %v439 = vpack.c.bf16 %v429, %v429
        %v440 = vpack.c.bf16 %v430, %v430
        %v441 = vld [vmem:[%s2] sm:$0xff]
        %443 = vset.pattern.permute.xlu0 0
        %444 = vperm.xlu0 %443, %v441
        %v445 = vpop.permute.xlu0 %444
        %vm447 = vcmask 588800
        %v449 = vsel %vm447, %v412, 0
        %vm451 = vcmask 1043456
        %v453 = vsel %vm451, %v439, 0
        %v456 = vsel %vm451, %v440, 0
        %458 = vmatprep.subr.bf16.mxu0 %v432
        %459 = vmatpush1.bf16.msra.mxu0 %v431
        %460 = vmatprep.subr.bf16.mxu0 %v434
        %461 = vmatpush1.bf16.msra.mxu0 %v433
        %462 = vmatprep.subr.bf16.mxu0 %v436
        %463 = vmatpush1.bf16.msra.mxu0 %v435
        %464 = vmatprep.subr.bf16.mxu0 %v438
        %465 = vmatpush1.bf16.msra.mxu0 %v437
        %466 = vmatprep.subr.bf16.mxu0 %v456
        %467 = vmatpush1.bf16.msra.mxu0 %v453
        %468 = vmatprep.subr.bf16.mxu0 0
        %469 = vmatpush1.bf16.msra.mxu0 0
        %470 = vmatprep.subr.bf16.mxu0 0
        %471 = vmatpush1.bf16.msra.mxu0 0
        %472 = vmatprep.subr.bf16.mxu0 0
        %473 = vmatpush1.bf16.msra.mxu0 0
        %474 = vmatprep.subr.bf16.mxu0 0
        %475 = vmatpush1.bf16.msra.mxu0 0
        %476 = vmatprep.subr.bf16.mxu0 0
        %477 = vmatpush1.bf16.msra.mxu0 0
        %478 = vmatprep.subr.bf16.mxu0 0
        %479 = vmatpush1.bf16.msra.mxu0 0
        %480 = vmatprep.subr.bf16.mxu0 0
        %481 = vmatpush1.bf16.msra.mxu0 0
        %482 = vmatprep.subr.bf16.mxu0 0
        %483 = vmatpush1.bf16.msra.mxu0 0
        %484 = vmatprep.subr.bf16.mxu0 0
        %485 = vmatpush1.bf16.msra.mxu0 0
        %486 = vmatprep.subr.bf16.mxu0 0
        %487 = vmatpush1.bf16.msra.mxu0 0
        %488 = vmatprep.subr.bf16.mxu0 0
        %489 = vmatpush1.bf16.msra.mxu0 0
        %490 = vmatprep.mubr.bf16.mxu0 0
        %491 = vmatmul.mubr.bf16.gmra.mrb[0].mxu0 %v449
        %v492 = vpop.f32.mrb[0].mxu0
        %v493 = vadd.f32 %v445, %v492
        %v494 = vpop.f32.mrb[0].mxu0
        %v495 = vadd.f32 %v445, %v494
        %v496 = vpop.f32.mrb[0].mxu0
        %v497 = vpop.f32.mrb[0].mxu0
        %498 = vdwg.mxu0
        %vm499 = vcmp.ge.f32.partialorder %v493, 0.0
        %vm500 = vcmp.ge.f32.partialorder %v495, 0.0
        %v501 = vmul.f32 %v493, 0.01
        %v502 = vmul.f32 %v495, 0.01
        %v503 = vsel %vm499, %v493, %v501
        %v504 = vsel %vm500, %v495, %v502
        %v505 = vpack.c.bf16 %v503, %v503
        %v506 = vpack.c.bf16 %v504, %v504
        %v509 = vunpack.c.l.b16 %v505
        %v510 = vunpack.c.l.b16 %v506
        %v511 = vpack.c.b16 %v510, %v509
        %513 = vst [vmem:[%s207] sm:$0xff] %v511
        %v514 = vld [vmem:[%s221] sm:$0x3]
        %v516 = vlaneseq
        %v517 = vshrl.u32 %v516, 7
        %v518 = vsub.s32 0, %v517
        %v519 = vrot.slane %v514, %v518
        %v520 = vlaneseq
        %v521 = vshrl.u32 %v520, 7
        %v522 = vsub.s32 1, %v521
        %v523 = vrot.slane %v514, %v522
        %v526 = vmul.f32 %v503, %v519
        %v527 = vmul.f32 %v504, %v523
        %v528 = vadd.f32 %v526, %v527
        %529 = vadd.xlane.f32.xlu0 %v528
        %v530 = vpop.xlane.xlu0 %529
        %531 = vst.msk [vmem:[%s231] sm:$0xff] %vm325, %v530
        %v532 = vmul.f32 %v526, %v503
        %v533 = vmul.f32 %v527, %v504
        %v534 = vadd.f32 %v532, %v533
        %535 = vadd.xlane.f32.xlu0 %v534
        %v536 = vpop.xlane.xlu0 %535
        %vm537 = vcmask 15368
        %538 = vst.msk [vmem:[%s231] sm:$0xff] %vm537, %v536
        %s539 = sand.u32 %s110, 1
        %s540 = scalar_lea.sflag [#allocation6], %s539
        %s541 = sand.u32 %s110, 1
        %s542 = smul.addr %s541, 8
        %s543 = scalar_lea.vmem [#allocation5], %s542
        %p544 = scmp.lt.s32.totalorder %s24, 1
        %s545 = scalar_select %p544, %s24, 1
        %p546 = scmp.lt.s32.totalorder %s25, 1
        %s547 = scalar_select %p546, %s25, 1
        %s548 = smul.addr %s545, 2
        %s549 = sadd.s32 %s547, %s548
        %s550 = smul.addr %s549, 8
        %s551 = scalar_lea.vmem %s5, %s550
        // Predicated region
        $region37: #{tpu_custom_call.1} parent=31 // pred_check
          %p552 = pneg %p120
        $region38: #{tpu_custom_call.1} parent=31 // pred_check_branch
          %554 = sbr.rel (%p552) target = $region40
        $region39: #{tpu_custom_call.1} parent=31 // pred_region
          %s555 = smul.u32 2, %s25
          %s557 = ssub.s32 128, 128
          %558 = vsyncadd %s540, %s557
          %s559 = smul.addr %s24, 4
          %s560 = sadd.s32 %s555, %s559
          %s561 = smul.addr %s560, 64
          %s562 = scalar_lea.hbm %s4, %s561
          %s564 = sshll.u32 %s543, 4
          %s565 = int_to_ptr.vmem [resolvable:$true] %s564
          %567 = dma.vmem_to_hbm [thread:$0]  %s565, 128, %s562, %s540
        $region40: #{tpu_custom_call.1} parent=31 // pred_fallthru
          _
        // Predicated region
        $region41: #{tpu_custom_call.1} parent=31 // pred_check
          %p568 = pneg %p148
        $region42: #{tpu_custom_call.1} parent=31 // pred_check_branch
          %570 = sbr.rel (%p568) target = $region44
        $region43: #{tpu_custom_call.1} parent=31 // pred_region
          _
        $region44: #{tpu_custom_call.1} parent=31 // pred_fallthru
          _
      $region32: #{tpu_custom_call.1} parent=5 // pred_fallthru
        _
      %p571 = scmp.le.s32.totalorder 2, %s15
      // Predicated region
      $region45: #{tpu_custom_call.1} parent=5 // pred_check
        %p572 = pneg %p571
      $region46: #{tpu_custom_call.1} parent=5 // pred_check_branch
        %574 = sbr.rel (%p572) target = $region48
      $region47: #{tpu_custom_call.1} parent=5 // pred_region
        %s575 = ssub.s32 %s15, 2
        // Predicated region
        $region49: #{tpu_custom_call.1} parent=47 // pred_check
          %p576 = pneg %p126
        $region50: #{tpu_custom_call.1} parent=47 // pred_check_branch
          %578 = sbr.rel (%p576) target = $region52
        $region51: #{tpu_custom_call.1} parent=47 // pred_region
          %s579 = sand.u32 %s111, 1
          %s580 = scalar_lea.sflag [#allocation6], %s579
          %s581 = sand.u32 %s111, 1
          %s582 = smul.addr %s581, 8
          %s583 = scalar_lea.vmem [#allocation5], %s582
          %584 = dma.done %s580, 128
        $region52: #{tpu_custom_call.1} parent=47 // pred_fallthru
          _
        // Predicated region
        $region53: #{tpu_custom_call.1} parent=47 // pred_check
          %p585 = pneg %p154
        $region54: #{tpu_custom_call.1} parent=47 // pred_check_branch
          %587 = sbr.rel (%p585) target = $region56
        $region55: #{tpu_custom_call.1} parent=47 // pred_region
          %p588 = scmp.lt.s32.totalorder %s26, 1
          %s589 = scalar_select %p588, %s26, 1
          %p590 = scmp.lt.s32.totalorder %s27, 1
          %s591 = scalar_select %p590, %s27, 1
          %s592 = smul.addr %s589, 2
          %s593 = sadd.s32 %s591, %s592
          %s594 = smul.addr %s593, 8
          %s595 = scalar_lea.vmem %s5, %s594
        $region56: #{tpu_custom_call.1} parent=47 // pred_fallthru
          _
      $region48: #{tpu_custom_call.1} parent=5 // pred_fallthru
        _
    $region6: #{tpu_custom_call.1} parent=1 // loop_footer
      %s19 = sadd.s32 1, %s15
    $region7: #{tpu_custom_call.1} parent=1 // loop_footer_branch
      %14 = sbr.rel target = $region3
    $region8: #{tpu_custom_call.1} parent=1 // loop_exit
      _
    %596 = vsyncpa [#allocation6], 1
    %s597 = scalar_lea.sflag [#allocation6], 1
    %598 = vsyncpa %s597, 1
  %599 = vsyncmov [#allocation4]
  %s600 = vpop.sfrf %599
  %p601 = scmp.eq.s32.totalorder %s600, 0
  %p602 = pneg %p601
  %604 = shalt.err (%p602)

</llo_original>
